<compile_context>
chip_gen: v6e
topology: v6e:2x2x1
jax: 0.10.0
libtpu: 0.0.40
codegen_flags: <defaults>
</compile_context>

<pallas_src>
import functools

import jax
import jax.numpy as jnp
from jax.experimental import pallas as pl
from jax.experimental.pallas import tpu as pltpu


def _round_up(x, m):
    return ((x + m - 1) // m) * m


def _attn_pool_kernel(x_ref, q_ref, o_ref, m_ref, l_ref, acc_ref, *,
                      s_valid, ts, needs_mask):
    # x_ref : (TB, TS, D) input tile
    # q_ref : (1, D)      pool query (broadcast across the grid)
    # o_ref : (TB, D)     pooled output block (resident across the S axis)
    # m_ref, l_ref : (TB, 1) f32 online-softmax running max / denominator
    # acc_ref      : (TB, D) f32 running weighted sum
    s_idx = pl.program_id(1)
    ns = pl.num_programs(1)

    @pl.when(s_idx == 0)
    def _init():
        m_ref[...] = jnp.full_like(m_ref, -jnp.inf)
        l_ref[...] = jnp.zeros_like(l_ref)
        acc_ref[...] = jnp.zeros_like(acc_ref)

    x = x_ref[...]                                            # native dtype
    q = q_ref[...].astype(x.dtype).reshape(1, 1, -1)          # (1, 1, D)

    # Lane-dense scores: (TB, TS) with the sequence tile on the lane axis.
    # Multiply in native dtype (bf16 stays bf16), accumulate in f32.
    scores = jnp.sum((x * q).astype(jnp.float32), axis=-1)    # (TB, TS)

    def _update(sc):
        # Online softmax update (numerically identical to full softmax).
        m_prev = m_ref[...]                                   # (TB, 1)
        m_cur = jnp.max(sc, axis=-1, keepdims=True)           # (TB, 1)
        m_new = jnp.maximum(m_prev, m_cur)
        alpha = jnp.exp(m_prev - m_new)                       # (TB, 1)
        p = jnp.exp(sc - m_new)                               # (TB, TS) f32
        l_ref[...] = alpha * l_ref[...] + jnp.sum(p, axis=-1, keepdims=True)
        pv = p.astype(x.dtype)
        partial = jnp.sum((x * pv[:, :, None]).astype(jnp.float32), axis=1)
        acc_ref[...] = alpha * acc_ref[...] + partial         # (TB, D)
        m_ref[...] = m_new

    if needs_mask:
        last = ns - 1

        @pl.when(s_idx != last)
        def _body():
            _update(scores)

        @pl.when(s_idx == last)
        def _tail():
            # Only the last S tile contains padded positions.
            pos = s_idx * ts + jax.lax.broadcasted_iota(
                jnp.int32, scores.shape, 1)
            _update(jnp.where(pos < s_valid, scores, -jnp.inf))
    else:
        _update(scores)

    @pl.when(s_idx == ns - 1)
    def _finalize():
        inv_l = pl.reciprocal(l_ref[...], approx=False)       # (TB, 1)
        o_ref[...] = (acc_ref[...] * inv_l).astype(o_ref.dtype)


def attention_pooling(x, pool_query, *, block_bytes=None, vmem_limit_bytes=None):
    """x: (B, S, D), pool_query: (D,) -> pooled (B, D)."""
    B, S, D = x.shape
    itemsize = jnp.dtype(x.dtype).itemsize

    # Generation-aware VMEM budget (v5e/v6e: 128 MiB, v7x: 64 MiB per TC).
    if vmem_limit_bytes is None:
        try:
            cap = int(getattr(pltpu.get_tpu_info(), "vmem_capacity_bytes"))
        except Exception:
            cap = 64 * 1024 * 1024
        vmem_limit_bytes = min(cap // 2, 64 * 1024 * 1024)
    if block_bytes is None:
        # Double-buffered x tile (2x block) + small f32 accumulators must fit
        # under vmem_limit_bytes with headroom.
        block_bytes = max(512 * 1024,
                          min(vmem_limit_bytes // 4, 16 * 1024 * 1024))

    # Batch tile: multiple of 8, capped at 32.  If that would leave a single
    # batch block, split it so the "parallel" axis spans both v7x TensorCores.
    b_round = _round_up(B, 8)
    tb = min(b_round, 32)
    if pl.cdiv(b_round, tb) == 1 and b_round >= 16:
        tb = _round_up(b_round // 2, 8)
    nb = pl.cdiv(b_round, tb)
    b_pad = nb * tb

    # Sequence tile: whole S if it fits the byte budget, otherwise a 128-lane
    # aligned tile so the lane-dense softmax path runs at full vector width.
    row_bytes = tb * D * itemsize
    if S * row_bytes <= block_bytes:
        ts = S
    else:
        ts = max(128, (block_bytes // row_bytes) // 128 * 128)
        ts = min(ts, _round_up(S, 128))
    ns = pl.cdiv(S, ts)
    s_pad = ns * ts

    x_in = x
    if b_pad != B or s_pad != S:
        x_in = jnp.pad(x, ((0, b_pad - B), (0, s_pad - S), (0, 0)))
    q2 = pool_query.reshape(1, D)

    kernel = functools.partial(
        _attn_pool_kernel, s_valid=S, ts=ts, needs_mask=(s_pad != S))

    out = pl.pallas_call(
        kernel,
        out_shape=jax.ShapeDtypeStruct((b_pad, D), x.dtype),
        grid_spec=pltpu.PrefetchScalarGridSpec(
            num_scalar_prefetch=0,
            grid=(nb, ns),
            in_specs=[
                pl.BlockSpec((tb, ts, D), lambda b, s: (b, s, 0)),
                pl.BlockSpec((1, D), lambda b, s: (0, 0)),
            ],
            out_specs=pl.BlockSpec((tb, D), lambda b, s: (b, 0)),
            scratch_shapes=[
                pltpu.VMEM((tb, 1), jnp.float32),   # running max m
                pltpu.VMEM((tb, 1), jnp.float32),   # running denom l
                pltpu.VMEM((tb, D), jnp.float32),   # running weighted sum
            ],
        ),
        compiler_params=pltpu.CompilerParams(
            dimension_semantics=("parallel", "arbitrary"),
            vmem_limit_bytes=int(vmem_limit_bytes),
        ),
    )(x_in, q2)

    return out[:B]


def attention_pooling_ref(x, pool_query):
    scores = jnp.einsum("bsd,d->bs", x, pool_query)
    weights = jax.nn.softmax(scores, axis=1)
    return jnp.sum(x * weights[..., None], axis=1)


if __name__ == "__main__":
    key = jax.random.PRNGKey(0)
    kx, kq, kx2 = jax.random.split(key, 3)

    # Small shapes consistent with the module: batch=2, seq=8, model_dim=32.
    B, S, D = 2, 8, 32
    x = jax.random.normal(kx, (B, S, D), dtype=jnp.float32)
    pool_query = jax.random.normal(kq, (D,), dtype=jnp.float32)

    out = attention_pooling(x, pool_query)
    out = jax.block_until_ready(out)
    ref = attention_pooling_ref(x, pool_query)
    assert out.shape == (B, D)
    assert jnp.allclose(out, ref, atol=1e-5, rtol=1e-5), (
        f"max abs diff {jnp.max(jnp.abs(out - ref))}"
    )

    # Second check: force the multi-S-tile online-softmax path (128-aligned
    # sequence tiles, ragged B and S padding, last-tile -inf mask) by
    # shrinking the per-block byte budget.
    B2, S2 = 3, 300
    x2 = jax.random.normal(kx2, (B2, S2, D), dtype=jnp.float32)
    out2 = attention_pooling(x2, pool_query, block_bytes=160 * 1024)
    out2 = jax.block_until_ready(out2)
    ref2 = attention_pooling_ref(x2, pool_query)
    assert out2.shape == (B2, D)
    assert jnp.allclose(out2, ref2, atol=1e-5, rtol=1e-5), (
        f"max abs diff {jnp.max(jnp.abs(out2 - ref2))}"
    )

    print("KERNEL_OK")
</pallas_src>

<mosaic_0001>
module attributes {stable_mosaic.version = 11 : i64} {
  func.func @_attn_pool_kernel(%arg0: i32, %arg1: i32, %arg2: memref<8x8x32xf32, #tpu.memory_space<vmem>>, %arg3: memref<1x32xf32, #tpu.memory_space<vmem>>, %arg4: memref<8x32xf32, #tpu.memory_space<vmem>>, %arg5: memref<8x1xf32, #tpu.memory_space<vmem>>, %arg6: memref<8x1xf32, #tpu.memory_space<vmem>>, %arg7: memref<8x32xf32, #tpu.memory_space<vmem>>) attributes {dimension_semantics = [#tpu.dimension_semantics<parallel>, #tpu.dimension_semantics<arbitrary>], iteration_bounds = array<i64: 1, 1>, scalar_prefetch = 0 : i64, scratch_operands = 3 : i64, tpu.core_type = #tpu.core_type<tc>, window_params = [{transform_indices = @transform_0, window_bounds = array<i64: 8, 8, 32>}, {pipeline_mode = #tpu.pipeline_mode<synchronous>, transform_indices = @transform_1, window_bounds = array<i64: 1, 32>}, {transform_indices = @transform_2, window_bounds = array<i64: 8, 32>}]} {
    %c0_i32 = arith.constant 0 : i32
    %0 = arith.cmpi eq, %arg1, %c0_i32 : i32
    %1 = arith.extui %0 : i1 to i32
    %c0_i32_0 = arith.constant 0 : i32
    %2 = arith.cmpi ne, %1, %c0_i32_0 : i32
    scf.if %2 {
      %cst_22 = arith.constant 0xFF800000 : f32
      %37 = vector.broadcast %cst_22 : f32 to vector<8x1xf32>
      %c0_23 = arith.constant 0 : index
      %c0_24 = arith.constant 0 : index
      %38 = vector.load %arg5[%c0_23, %c0_24] : memref<8x1xf32, #tpu.memory_space<vmem>>, vector<8x1xf32>
      tpu.vector_store %arg5[%c0_23, %c0_24], %37 {strides = array<i32>} : memref<8x1xf32, #tpu.memory_space<vmem>>, vector<8x1xf32>,
      %cst_25 = arith.constant 0.000000e+00 : f32
      %39 = vector.broadcast %cst_25 : f32 to vector<8x1xf32>
      %c0_26 = arith.constant 0 : index
      %c0_27 = arith.constant 0 : index
      %40 = vector.load %arg6[%c0_26, %c0_27] : memref<8x1xf32, #tpu.memory_space<vmem>>, vector<8x1xf32>
      tpu.vector_store %arg6[%c0_26, %c0_27], %39 {strides = array<i32>} : memref<8x1xf32, #tpu.memory_space<vmem>>, vector<8x1xf32>,
      %cst_28 = arith.constant 0.000000e+00 : f32
      %41 = vector.broadcast %cst_28 : f32 to vector<8x32xf32>
      %c0_29 = arith.constant 0 : index
      %c0_30 = arith.constant 0 : index
      %42 = vector.load %arg7[%c0_29, %c0_30] : memref<8x32xf32, #tpu.memory_space<vmem>>, vector<8x32xf32>
      tpu.vector_store %arg7[%c0_29, %c0_30], %41 {strides = array<i32>} : memref<8x32xf32, #tpu.memory_space<vmem>>, vector<8x32xf32>,
    } else {
    }
    %c0 = arith.constant 0 : index
    %c0_1 = arith.constant 0 : index
    %c0_2 = arith.constant 0 : index
    %3 = vector.load %arg2[%c0, %c0_1, %c0_2] : memref<8x8x32xf32, #tpu.memory_space<vmem>>, vector<8x8x32xf32>
    %c0_3 = arith.constant 0 : index
    %c0_4 = arith.constant 0 : index
    %4 = vector.load %arg3[%c0_3, %c0_4] : memref<1x32xf32, #tpu.memory_space<vmem>>, vector<1x32xf32>
    %5 = vector.shape_cast %4 : vector<1x32xf32> to vector<1x1x32xf32>
    %6 = vector.broadcast %5 : vector<1x1x32xf32> to vector<8x8x32xf32>
    %7 = arith.mulf %3, %6 : vector<8x8x32xf32>
    %cst = arith.constant dense<0.000000e+00> : vector<8x8xf32>
    %8 = vector.multi_reduction <add>, %7, %cst [2] : vector<8x8x32xf32> to vector<8x8xf32>
    %c0_5 = arith.constant 0 : index
    %c0_6 = arith.constant 0 : index
    %9 = vector.load %arg5[%c0_5, %c0_6] : memref<8x1xf32, #tpu.memory_space<vmem>>, vector<8x1xf32>
    %cst_7 = arith.constant dense<0xFF800000> : vector<8xf32>
    %10 = vector.multi_reduction <maximumf>, %8, %cst_7 [1] : vector<8x8xf32> to vector<8xf32>
    %11 = vector.shape_cast %10 : vector<8xf32> to vector<8x1xf32>
    %12 = arith.maximumf %9, %11 : vector<8x1xf32>
    %13 = arith.subf %9, %12 : vector<8x1xf32>
    %14 = math.exp %13 : vector<8x1xf32>
    %15 = vector.broadcast %12 : vector<8x1xf32> to vector<8x8xf32>
    %16 = arith.subf %8, %15 : vector<8x8xf32>
    %17 = math.exp %16 : vector<8x8xf32>
    %c0_8 = arith.constant 0 : index
    %c0_9 = arith.constant 0 : index
    %18 = vector.load %arg6[%c0_8, %c0_9] : memref<8x1xf32, #tpu.memory_space<vmem>>, vector<8x1xf32>
    %19 = arith.mulf %14, %18 : vector<8x1xf32>
    %cst_10 = arith.constant dense<0.000000e+00> : vector<8xf32>
    %20 = vector.multi_reduction <add>, %17, %cst_10 [1] : vector<8x8xf32> to vector<8xf32>
    %21 = vector.shape_cast %20 : vector<8xf32> to vector<8x1xf32>
    %22 = arith.addf %19, %21 : vector<8x1xf32>
    %c0_11 = arith.constant 0 : index
    %c0_12 = arith.constant 0 : index
    %23 = vector.load %arg6[%c0_11, %c0_12] : memref<8x1xf32, #tpu.memory_space<vmem>>, vector<8x1xf32>
    tpu.vector_store %arg6[%c0_11, %c0_12], %22 {strides = array<i32>} : memref<8x1xf32, #tpu.memory_space<vmem>>, vector<8x1xf32>,
    %24 = vector.shape_cast %17 : vector<8x8xf32> to vector<8x8x1xf32>
    %25 = vector.broadcast %24 : vector<8x8x1xf32> to vector<8x8x32xf32>
    %26 = arith.mulf %3, %25 : vector<8x8x32xf32>
    %cst_13 = arith.constant dense<0.000000e+00> : vector<8x32xf32>
    %27 = vector.multi_reduction <add>, %26, %cst_13 [1] : vector<8x8x32xf32> to vector<8x32xf32>
    %c0_14 = arith.constant 0 : index
    %c0_15 = arith.constant 0 : index
    %28 = vector.load %arg7[%c0_14, %c0_15] : memref<8x32xf32, #tpu.memory_space<vmem>>, vector<8x32xf32>
    %29 = vector.broadcast %14 : vector<8x1xf32> to vector<8x32xf32>
    %30 = arith.mulf %29, %28 : vector<8x32xf32>
    %31 = arith.addf %30, %27 : vector<8x32xf32>
    %c0_16 = arith.constant 0 : index
    %c0_17 = arith.constant 0 : index
    %32 = vector.load %arg7[%c0_16, %c0_17] : memref<8x32xf32, #tpu.memory_space<vmem>>, vector<8x32xf32>
    tpu.vector_store %arg7[%c0_16, %c0_17], %31 {strides = array<i32>} : memref<8x32xf32, #tpu.memory_space<vmem>>, vector<8x32xf32>,
    %c0_18 = arith.constant 0 : index
    %c0_19 = arith.constant 0 : index
    %33 = vector.load %arg5[%c0_18, %c0_19] : memref<8x1xf32, #tpu.memory_space<vmem>>, vector<8x1xf32>
    tpu.vector_store %arg5[%c0_18, %c0_19], %12 {strides = array<i32>} : memref<8x1xf32, #tpu.memory_space<vmem>>, vector<8x1xf32>,
    %c0_i32_20 = arith.constant 0 : i32
    %34 = arith.cmpi eq, %arg1, %c0_i32_20 : i32
    %35 = arith.extui %34 : i1 to i32
    %c0_i32_21 = arith.constant 0 : i32
    %36 = arith.cmpi ne, %35, %c0_i32_21 : i32
    scf.if %36 {
      %c0_22 = arith.constant 0 : index
      %c0_23 = arith.constant 0 : index
      %37 = vector.load %arg6[%c0_22, %c0_23] : memref<8x1xf32, #tpu.memory_space<vmem>>, vector<8x1xf32>
      %38 = tpu.reciprocal %37 : vector<8x1xf32> -> vector<8x1xf32>
      %c0_24 = arith.constant 0 : index
      %c0_25 = arith.constant 0 : index
      %39 = vector.load %arg7[%c0_24, %c0_25] : memref<8x32xf32, #tpu.memory_space<vmem>>, vector<8x32xf32>
      %40 = vector.broadcast %38 : vector<8x1xf32> to vector<8x32xf32>
      %41 = arith.mulf %39, %40 : vector<8x32xf32>
      %c0_26 = arith.constant 0 : index
      %c0_27 = arith.constant 0 : index
      %42 = vector.load %arg4[%c0_26, %c0_27] : memref<8x32xf32, #tpu.memory_space<vmem>>, vector<8x32xf32>
      tpu.vector_store %arg4[%c0_26, %c0_27], %41 {strides = array<i32>} : memref<8x32xf32, #tpu.memory_space<vmem>>, vector<8x32xf32>,
    } else {
    }
    return
  }
  func.func @transform_0(%arg0: i32, %arg1: i32) -> (i32, i32, i32) {
    %c0_i32 = arith.constant 0 : i32
    %c0_i32_0 = arith.constant 0 : i32
    return %arg0, %arg1, %c0_i32 : i32, i32, i32
  }
  func.func @transform_1(%arg0: i32, %arg1: i32) -> (i32, i32) {
    %c0_i32 = arith.constant 0 : i32
    %c0_i32_0 = arith.constant 0 : i32
    %c0_i32_1 = arith.constant 0 : i32
    return %c0_i32, %c0_i32_0 : i32, i32
  }
  func.func @transform_2(%arg0: i32, %arg1: i32) -> (i32, i32) {
    %c0_i32 = arith.constant 0 : i32
    %c0_i32_0 = arith.constant 0 : i32
    return %arg0, %c0_i32 : i32, i32
  }
}

</mosaic_0001>

<llo_original>
// kernel: tpu_custom_call.1
$region0: #{tpu_custom_call.1}
  #allocation0 [shape = 'u32[]', space=smem, size = 0x4, offset = 0x4, fixed_abs, tag = 'smem constant byte address 0x4 - core index']
  #allocation1 [shape = 'u32[144,128]{1,0:T(1,128)}', space=vmem, size = 0x12000, scoped, tag = 'internal scratch']
  #allocation2 [shape = 'f32[8,1]{1,0:T(8,128)}', space=vmem, size = 0x1000, scoped, tag = 'scratch operand']
  #allocation3 [shape = 'f32[8,1]{1,0:T(8,128)}', space=vmem, size = 0x1000, scoped, tag = 'scratch operand']
  #allocation4 [shape = 'f32[8,32]{1,0:T(8,128)}', space=vmem, size = 0x1000, scoped, tag = 'scratch operand']
  %s0 = inlined_call_operand.hbm [shape: f32[8,8,32], index: 0, kind: input, shape index: {}]
  %s1 = inlined_call_operand.vmem [shape: f32[1,32], index: 1, kind: input, shape index: {}]
  %s2 = inlined_call_operand.hbm [shape: f32[8,32], index: 2, kind: output, shape index: {}]
  %s3 = sld [smem:[#allocation0]]
  $region30: #{tpu_custom_call.1} parent=0
    _
  %s5 = ssub.s32 1, %s3
  %s6 = scalar_select 0, %s5, %s3
  $region1: #{tpu_custom_call.1} parent=0
    #allocation5 [shape = 'u8[32768]{0}', space=vmem, size = 0x8000, scoped, tag = 'input window, operand 0, single buffered']
    #allocation6 [shape = 's32[1]{0}', space=sflag, size = 0x4, scoped, tag = 'scoped memory for tpu_custom_call.1']
    #allocation7 [shape = 's32[1]{0}', space=sflag, size = 0x4, scoped, tag = 'scoped memory for tpu_custom_call.1']
    #allocation8 [shape = 'u8[4096]{0}', space=vmem, size = 0x1000, scoped, tag = 'output window, operand 0, single buffered']
    %7 = vsyncpa [#allocation6], 0
    %8 = vsyncpa [#allocation7], 0
    // Predicated region
    $region2: #{tpu_custom_call.1} parent=1 // pred_check
      _
    $region3: #{tpu_custom_call.1} parent=1 // pred_check_branch
      %10 = sbr.rel (0) target = $region5
    $region4: #{tpu_custom_call.1} parent=1 // pred_region
      %s12 = ssub.s32 1024, 1024
      %13 = vsyncadd [#allocation6], %s12
      %s14 = sshll.u32 [#allocation5], 4
      %s15 = int_to_ptr.vmem [resolvable:$true] %s14
      %20 = dma.hbm_to_vmem [thread:$0]  %s0, 1024, %s15, [#allocation6], 128, 128, 8
    $region5: #{tpu_custom_call.1} parent=1 // pred_fallthru
      _
    // Predicated region
    $region6: #{tpu_custom_call.1} parent=1 // pred_check
      _
    $region7: #{tpu_custom_call.1} parent=1 // pred_check_branch
      %22 = sbr.rel (0) target = $region9
    $region8: #{tpu_custom_call.1} parent=1 // pred_region
      _
    $region9: #{tpu_custom_call.1} parent=1 // pred_fallthru
      _
    // Predicated region
    $region10: #{tpu_custom_call.1} parent=1 // pred_check
      _
    $region11: #{tpu_custom_call.1} parent=1 // pred_check_branch
      %24 = sbr.rel (0) target = $region13
    $region12: #{tpu_custom_call.1} parent=1 // pred_region
      %25 = dma.done [#allocation6], 1024
    $region13: #{tpu_custom_call.1} parent=1 // pred_fallthru
      _
    %p26 = scmp.eq.s32.totalorder 0, 0
    // Predicated region
    $region14: #{tpu_custom_call.1} parent=1 // pred_check
      %p27 = pneg %p26
    $region15: #{tpu_custom_call.1} parent=1 // pred_check_branch
      %29 = sbr.rel (%p27) target = $region17
    $region16: #{tpu_custom_call.1} parent=1 // pred_region
      %vm30 = vcmask 7168
      %31 = vst.msk [vmem:[#allocation2] sm:$0xff] %vm30, -inf
      %32 = vst.msk [vmem:[#allocation3] sm:$0xff] %vm30, 0.0
      %vm33 = vcmask 261120
      %34 = vst.msk [vmem:[#allocation4] sm:$0xff] %vm33, 0.0
    $region17: #{tpu_custom_call.1} parent=1 // pred_fallthru
      _
    %v35 = vld [vmem:[#allocation5] sm:$0xff]
    %v36 = vld [vmem:[#allocation5 + $0x8] sm:$0xff]
    %v37 = vld [vmem:[#allocation5 + $0x10] sm:$0xff]
    %v38 = vld [vmem:[#allocation5 + $0x18] sm:$0xff]
    %v39 = vld [vmem:[#allocation5 + $0x20] sm:$0xff]
    %v40 = vld [vmem:[#allocation5 + $0x28] sm:$0xff]
    %v41 = vld [vmem:[#allocation5 + $0x30] sm:$0xff]
    %v42 = vld [vmem:[#allocation5 + $0x38] sm:$0xff]
    %v43 = vld [vmem:[%s1] sm:$0x1]
    %v45 = vlaneseq
    %v46 = vshrl.u32 %v45, 7
    %v47 = vsub.s32 0, %v46
    %v48 = vrot.slane %v43, %v47
    %v50 = vmul.f32 %v35, %v48
    %v51 = vmul.f32 %v36, %v48
    %v52 = vmul.f32 %v37, %v48
    %v53 = vmul.f32 %v38, %v48
    %v54 = vmul.f32 %v39, %v48
    %v55 = vmul.f32 %v40, %v48
    %v56 = vmul.f32 %v41, %v48
    %v57 = vmul.f32 %v42, %v48
    %vm58 = vcmask 261120
    %v59 = vsel %vm58, %v50, 0.0
    %60 = vadd.xlane.f32.xlu0 %v59
    %v61 = vpop.xlane.xlu0 %60
    %v62 = vsel %vm58, %v51, 0.0
    %63 = vadd.xlane.f32.xlu0 %v62
    %v64 = vpop.xlane.xlu0 %63
    %v65 = vsel %vm58, %v52, 0.0
    %66 = vadd.xlane.f32.xlu0 %v65
    %v67 = vpop.xlane.xlu0 %66
    %v68 = vsel %vm58, %v53, 0.0
    %69 = vadd.xlane.f32.xlu0 %v68
    %v70 = vpop.xlane.xlu0 %69
    %v71 = vsel %vm58, %v54, 0.0
    %72 = vadd.xlane.f32.xlu0 %v71
    %v73 = vpop.xlane.xlu0 %72
    %v74 = vsel %vm58, %v55, 0.0
    %75 = vadd.xlane.f32.xlu0 %v74
    %v76 = vpop.xlane.xlu0 %75
    %v77 = vsel %vm58, %v56, 0.0
    %78 = vadd.xlane.f32.xlu0 %v77
    %v79 = vpop.xlane.xlu0 %78
    %v80 = vsel %vm58, %v57, 0.0
    %81 = vadd.xlane.f32.xlu0 %v80
    %v82 = vpop.xlane.xlu0 %81
    %v83 = vld [vmem:[#allocation2] sm:$0xff]
    %v92 = vlaneseq
    %v93 = vand.u32 %v92, 127
    %v94 = vlaneseq
    %v95 = vshrl.u32 %v94, 7
    %v96 = vsub.s32 %v93, %v95
    %v97 = vrot.slane %v61, %v96
    %v98 = vlaneseq
    %v99 = vshrl.u32 %v98, 7
    %v100 = vsub.s32 %v93, %v99
    %v101 = vrot.slane %v64, %v100
    %v102 = vlaneseq
    %v103 = vshrl.u32 %v102, 7
    %v104 = vsub.s32 %v93, %v103
    %v105 = vrot.slane %v67, %v104
    %v106 = vlaneseq
    %v107 = vshrl.u32 %v106, 7
    %v108 = vsub.s32 %v93, %v107
    %v109 = vrot.slane %v70, %v108
    %v110 = vlaneseq
    %v111 = vshrl.u32 %v110, 7
    %v112 = vsub.s32 %v93, %v111
    %v113 = vrot.slane %v73, %v112
    %v114 = vlaneseq
    %v115 = vshrl.u32 %v114, 7
    %v116 = vsub.s32 %v93, %v115
    %v117 = vrot.slane %v76, %v116
    %v118 = vlaneseq
    %v119 = vshrl.u32 %v118, 7
    %v120 = vsub.s32 %v93, %v119
    %v121 = vrot.slane %v79, %v120
    %v122 = vlaneseq
    %v123 = vshrl.u32 %v122, 7
    %v124 = vsub.s32 %v93, %v123
    %v125 = vrot.slane %v82, %v124
    %vm126 = vcmask 1041409
    %v127 = vsel %vm126, %v101, %v97
    %vm128 = vcmask 1042434
    %v129 = vsel %vm128, %v105, %v127
    %vm130 = vcmask 1043459
    %v131 = vsel %vm130, %v109, %v129
    %vm132 = vcmask 1044484
    %v133 = vsel %vm132, %v113, %v131
    %vm134 = vcmask 1045509
    %v135 = vsel %vm134, %v117, %v133
    %vm136 = vcmask 1046534
    %v137 = vsel %vm136, %v121, %v135
    %vm138 = vcmask 1047559
    %v139 = vsel %vm138, %v125, %v137
    %vm141 = vcmask 64512
    %v142 = vsel %vm141, %v139, -inf
    %143 = vmax.xlane.f32.xlu0 %v142
    %v144 = vpop.xlane.xlu0 %143
    %v145 = vmax.f32 %v83, %v144
    %v146 = vsub.f32 %v83, %v145
    %v147 = vmul.f32 %v146, 1.442695
    %v148 = vpow.pop %v147
    %150 = vset.pattern.permute.xlu0 0
    %151 = vperm.xlu0 %150, %v145
    %v152 = vpop.permute.xlu0 %151
    %v153 = vlaneseq
    %v154 = vshrl.u32 %v153, 7
    %v155 = vsub.s32 0, %v154
    %v156 = vrot.slane %v152, %v155
    %v157 = vlaneseq
    %v158 = vshrl.u32 %v157, 7
    %v159 = vsub.s32 1, %v158
    %v160 = vrot.slane %v152, %v159
    %v161 = vlaneseq
    %v162 = vshrl.u32 %v161, 7
    %v163 = vsub.s32 2, %v162
    %v164 = vrot.slane %v152, %v163
    %v165 = vlaneseq
    %v166 = vshrl.u32 %v165, 7
    %v167 = vsub.s32 3, %v166
    %v168 = vrot.slane %v152, %v167
    %v169 = vlaneseq
    %v170 = vshrl.u32 %v169, 7
    %v171 = vsub.s32 4, %v170
    %v172 = vrot.slane %v152, %v171
    %v173 = vlaneseq
    %v174 = vshrl.u32 %v173, 7
    %v175 = vsub.s32 5, %v174
    %v176 = vrot.slane %v152, %v175
    %v177 = vlaneseq
    %v178 = vshrl.u32 %v177, 7
    %v179 = vsub.s32 6, %v178
    %v180 = vrot.slane %v152, %v179
    %v181 = vlaneseq
    %v182 = vshrl.u32 %v181, 7
    %v183 = vsub.s32 7, %v182
    %v184 = vrot.slane %v152, %v183
    %v193 = vsub.f32 %v61, %v156
    %v194 = vsub.f32 %v64, %v160
    %v195 = vsub.f32 %v67, %v164
    %v196 = vsub.f32 %v70, %v168
    %v197 = vsub.f32 %v73, %v172
    %v198 = vsub.f32 %v76, %v176
    %v199 = vsub.f32 %v79, %v180
    %v200 = vsub.f32 %v82, %v184
    %v201 = vmul.f32 %v193, 1.442695
    %v202 = vpow.pop %v201
    %v203 = vmul.f32 %v194, 1.442695
    %v204 = vpow.pop %v203
    %v205 = vmul.f32 %v195, 1.442695
    %v206 = vpow.pop %v205
    %v207 = vmul.f32 %v196, 1.442695
    %v208 = vpow.pop %v207
    %v209 = vmul.f32 %v197, 1.442695
    %v210 = vpow.pop %v209
    %v211 = vmul.f32 %v198, 1.442695
    %v212 = vpow.pop %v211
    %v213 = vmul.f32 %v199, 1.442695
    %v214 = vpow.pop %v213
    %v215 = vmul.f32 %v200, 1.442695
    %v216 = vpow.pop %v215
    %v217 = vld [vmem:[#allocation3] sm:$0xff]
    %v218 = vmul.f32 %v148, %v217
    %227 = vset.pattern.permute.xlu0 0
    %228 = vperm.xlu0 %227, %v202
    %v229 = vpop.permute.xlu0 %228
    %230 = vset.pattern.permute.xlu0 0
    %231 = vperm.xlu0 %230, %v204
    %v232 = vpop.permute.xlu0 %231
    %233 = vset.pattern.permute.xlu0 0
    %234 = vperm.xlu0 %233, %v206
    %v235 = vpop.permute.xlu0 %234
    %236 = vset.pattern.permute.xlu0 0
    %237 = vperm.xlu0 %236, %v208
    %v238 = vpop.permute.xlu0 %237
    %239 = vset.pattern.permute.xlu0 0
    %240 = vperm.xlu0 %239, %v210
    %v241 = vpop.permute.xlu0 %240
    %242 = vset.pattern.permute.xlu0 0
    %243 = vperm.xlu0 %242, %v212
    %v244 = vpop.permute.xlu0 %243
    %245 = vset.pattern.permute.xlu0 0
    %246 = vperm.xlu0 %245, %v214
    %v247 = vpop.permute.xlu0 %246
    %248 = vset.pattern.permute.xlu0 0
    %249 = vperm.xlu0 %248, %v216
    %v250 = vpop.permute.xlu0 %249
    %v251 = vlaneseq
    %v252 = vshrl.u32 %v251, 7
    %v253 = vsub.s32 %v93, %v252
    %v254 = vrot.slane %v229, %v253
    %v255 = vlaneseq
    %v256 = vshrl.u32 %v255, 7
    %v257 = vsub.s32 %v93, %v256
    %v258 = vrot.slane %v232, %v257
    %v259 = vlaneseq
    %v260 = vshrl.u32 %v259, 7
    %v261 = vsub.s32 %v93, %v260
    %v262 = vrot.slane %v235, %v261
    %v263 = vlaneseq
    %v264 = vshrl.u32 %v263, 7
    %v265 = vsub.s32 %v93, %v264
    %v266 = vrot.slane %v238, %v265
    %v267 = vlaneseq
    %v268 = vshrl.u32 %v267, 7
    %v269 = vsub.s32 %v93, %v268
    %v270 = vrot.slane %v241, %v269
    %v271 = vlaneseq
    %v272 = vshrl.u32 %v271, 7
    %v273 = vsub.s32 %v93, %v272
    %v274 = vrot.slane %v244, %v273
    %v275 = vlaneseq
    %v276 = vshrl.u32 %v275, 7
    %v277 = vsub.s32 %v93, %v276
    %v278 = vrot.slane %v247, %v277
    %v279 = vlaneseq
    %v280 = vshrl.u32 %v279, 7
    %v281 = vsub.s32 %v93, %v280
    %v282 = vrot.slane %v250, %v281
    %v283 = vsel %vm126, %v258, %v254
    %v284 = vsel %vm128, %v262, %v283
    %v285 = vsel %vm130, %v266, %v284
    %v286 = vsel %vm132, %v270, %v285
    %v287 = vsel %vm134, %v274, %v286
    %v288 = vsel %vm136, %v278, %v287
    %v289 = vsel %vm138, %v282, %v288
    %v291 = vsel %vm141, %v289, 0.0
    %292 = vadd.xlane.f32.xlu0 %v291
    %v293 = vpop.xlane.xlu0 %292
    %v294 = vadd.f32 %v218, %v293
    %vm295 = vcmask 7168
    %296 = vst.msk [vmem:[#allocation3] sm:$0xff] %vm295, %v294
    %v305 = vmul.f32 %v35, %v229
    %v306 = vmul.f32 %v36, %v232
    %v307 = vmul.f32 %v37, %v235
    %v308 = vmul.f32 %v38, %v238
    %v309 = vmul.f32 %v39, %v241
    %v310 = vmul.f32 %v40, %v244
    %v311 = vmul.f32 %v41, %v247
    %v312 = vmul.f32 %v42, %v250
    %v313 = vsel %vm58, %v305, 0.0
    %v314 = vrot.slane %v313, 4
    %v315 = vadd.f32 %v313, %v314
    %v316 = vrot.slane %v315, 2
    %v317 = vadd.f32 %v315, %v316
    %v318 = vrot.slane %v317, 1
    %v319 = vadd.f32 %v317, %v318
    %v320 = vsel %vm58, %v306, 0.0
    %v321 = vrot.slane %v320, 4
    %v322 = vadd.f32 %v320, %v321
    %v323 = vrot.slane %v322, 2
    %v324 = vadd.f32 %v322, %v323
    %v325 = vrot.slane %v324, 1
    %v326 = vadd.f32 %v324, %v325
    %v327 = vsel %vm58, %v307, 0.0
    %v328 = vrot.slane %v327, 4
    %v329 = vadd.f32 %v327, %v328
    %v330 = vrot.slane %v329, 2
    %v331 = vadd.f32 %v329, %v330
    %v332 = vrot.slane %v331, 1
    %v333 = vadd.f32 %v331, %v332
    %v334 = vsel %vm58, %v308, 0.0
    %v335 = vrot.slane %v334, 4
    %v336 = vadd.f32 %v334, %v335
    %v337 = vrot.slane %v336, 2
    %v338 = vadd.f32 %v336, %v337
    %v339 = vrot.slane %v338, 1
    %v340 = vadd.f32 %v338, %v339
    %v341 = vsel %vm58, %v309, 0.0
    %v342 = vrot.slane %v341, 4
    %v343 = vadd.f32 %v341, %v342
    %v344 = vrot.slane %v343, 2
    %v345 = vadd.f32 %v343, %v344
    %v346 = vrot.slane %v345, 1
    %v347 = vadd.f32 %v345, %v346
    %v348 = vsel %vm58, %v310, 0.0
    %v349 = vrot.slane %v348, 4
    %v350 = vadd.f32 %v348, %v349
    %v351 = vrot.slane %v350, 2
    %v352 = vadd.f32 %v350, %v351
    %v353 = vrot.slane %v352, 1
    %v354 = vadd.f32 %v352, %v353
    %v355 = vsel %vm58, %v311, 0.0
    %v356 = vrot.slane %v355, 4
    %v357 = vadd.f32 %v355, %v356
    %v358 = vrot.slane %v357, 2
    %v359 = vadd.f32 %v357, %v358
    %v360 = vrot.slane %v359, 1
    %v361 = vadd.f32 %v359, %v360
    %v362 = vsel %vm58, %v312, 0.0
    %v363 = vrot.slane %v362, 4
    %v364 = vadd.f32 %v362, %v363
    %v365 = vrot.slane %v364, 2
    %v366 = vadd.f32 %v364, %v365
    %v367 = vrot.slane %v366, 1
    %v368 = vadd.f32 %v366, %v367
    %v369 = vld [vmem:[#allocation4] sm:$0xff]
    %371 = vset.pattern.permute.xlu0 0
    %372 = vperm.xlu0 %371, %v148
    %v373 = vpop.permute.xlu0 %372
    %v375 = vmul.f32 %v373, %v369
    %v384 = vsel %vm126, %v326, %v319
    %v385 = vsel %vm128, %v333, %v384
    %v386 = vsel %vm130, %v340, %v385
    %v387 = vsel %vm132, %v347, %v386
    %v388 = vsel %vm134, %v354, %v387
    %v389 = vsel %vm136, %v361, %v388
    %v390 = vsel %vm138, %v368, %v389
    %v392 = vadd.f32 %v375, %v390
    %393 = vst.msk [vmem:[#allocation4] sm:$0xff] %vm58, %v392
    %394 = vst.msk [vmem:[#allocation2] sm:$0xff] %vm295, %v145
    // Predicated region
    $region18: #{tpu_custom_call.1} parent=1 // pred_check
      %p395 = pneg %p26
    $region19: #{tpu_custom_call.1} parent=1 // pred_check_branch
      %397 = sbr.rel (%p395) target = $region21
    $region20: #{tpu_custom_call.1} parent=1 // pred_region
      %v398 = vld [vmem:[#allocation3] sm:$0xff]
      %v399 = vrcp.pop %v398
      %v400 = vld [vmem:[#allocation4] sm:$0xff]
      %402 = vset.pattern.permute.xlu0 0
      %403 = vperm.xlu0 %402, %v399
      %v404 = vpop.permute.xlu0 %403
      %v406 = vmul.f32 %v400, %v404
      %407 = vst.msk [vmem:[#allocation8] sm:$0xff] %vm58, %v406
    $region21: #{tpu_custom_call.1} parent=1 // pred_fallthru
      _
    // Predicated region
    $region22: #{tpu_custom_call.1} parent=1 // pred_check
      _
    $region23: #{tpu_custom_call.1} parent=1 // pred_check_branch
      %409 = sbr.rel (0) target = $region25
    $region24: #{tpu_custom_call.1} parent=1 // pred_region
      %s411 = ssub.s32 128, 128
      %412 = vsyncadd [#allocation7], %s411
      %s414 = sshll.u32 [#allocation8], 4
      %s415 = int_to_ptr.vmem [resolvable:$true] %s414
      %417 = dma.vmem_to_hbm [thread:$0]  %s415, 128, %s2, [#allocation7]
    $region25: #{tpu_custom_call.1} parent=1 // pred_fallthru
      _
    // Predicated region
    $region26: #{tpu_custom_call.1} parent=1 // pred_check
      _
    $region27: #{tpu_custom_call.1} parent=1 // pred_check_branch
      %419 = sbr.rel (0) target = $region29
    $region28: #{tpu_custom_call.1} parent=1 // pred_region
      %420 = dma.done [#allocation7], 128
    $region29: #{tpu_custom_call.1} parent=1 // pred_fallthru
      _
    %421 = vsyncpa [#allocation6], 1
    %422 = vsyncpa [#allocation7], 1

</llo_original>
